<compile_context>
chip_gen: v7x
topology: tpu7x:2x2x1
jax: 0.10.0
libtpu: 0.0.40
codegen_flags: <defaults>
</compile_context>

<pallas_src>
import functools

import jax
import jax.numpy as jnp
from jax.experimental import pallas as pl
from jax.experimental.pallas import tpu as pltpu

BN_EPS = 1e-5


def _conv_stats_kernel(x_ref, w0_ref, w1_ref, w2_ref, b_ref, g_ref, be_ref,
                       y_ref, st_ref, *, inv_count):
    """Pass 1: fused conv1/conv2 matmul, stage y, accumulate BN statistics."""
    n = pl.program_id(0)
    n_last = pl.num_programs(0) - 1

    x = x_ref[0]                                     # (L, Cin) f32
    length, cin = x.shape

    # k=3 / padding=1 taps, formed in-kernel (no host-side im2col):
    #   x_prev[l] = x[l-1] (zero at l=0), x_next[l] = x[l+1] (zero at l=L-1).
    zero_row = jnp.zeros((1, cin), dtype=x.dtype)
    x_prev = jnp.concatenate([zero_row, x[:length - 1, :]], axis=0)
    x_next = jnp.concatenate([x[1:, :], zero_row], axis=0)

    # conv1 & conv2 fused along output channels (2*Cout wide); bf16 MXU inputs
    # with f32 accumulation.
    wdt = w0_ref.dtype
    y = jnp.dot(x_prev.astype(wdt), w0_ref[...], preferred_element_type=jnp.float32)
    y = y + jnp.dot(x.astype(wdt), w1_ref[...], preferred_element_type=jnp.float32)
    y = y + jnp.dot(x_next.astype(wdt), w2_ref[...], preferred_element_type=jnp.float32)
    y = y + b_ref[...]                               # conv bias, (1, 2*Cout)
    y_ref[0] = y

    # Streaming per-channel sum / sum-of-squares in the resident stats block.
    @pl.when(n == 0)
    def _init():
        st_ref[...] = jnp.zeros_like(st_ref)

    st_ref[...] += jnp.concatenate(
        [jnp.sum(y, axis=0, keepdims=True),
         jnp.sum(y * y, axis=0, keepdims=True)], axis=0)

    # Last grid step: fold stats into per-channel scale/shift so pass 2 is a
    # single multiply-add per element (y * scale + shift).
    @pl.when(n == n_last)
    def _finalize():
        mean = st_ref[0:1, :] * inv_count
        var = st_ref[1:2, :] * inv_count - mean * mean      # biased variance, f32
        scale = g_ref[...] * jax.lax.rsqrt(var + BN_EPS)
        shift = be_ref[...] - mean * scale
        st_ref[...] = jnp.concatenate([scale, shift], axis=0)


def _norm_gate_pool_kernel(st_ref, y_ref, x_ref, p_ref, *, out_c):
    """Pass 2: folded BN, sigmoid gate, MaxPool1d(2)."""
    y = y_ref[0]                                     # (L, 2*Cout) f32
    length = y.shape[0]
    scale = st_ref[0:1, :]
    shift = st_ref[1:2, :]
    z = y * scale + shift                            # folded BN: 2 VPU ops / elem
    x = z[:, :out_c] * jax.nn.sigmoid(z[:, out_c:])  # gated activation (L, Cout)
    x_ref[0] = x
    # MaxPool1d(2): adjacent positions are adjacent sublanes -> sublane-pair max
    # (keeps the pooled output lane width = Cout, no lane shuffle).
    p_ref[0] = jnp.max(x.reshape(length // 2, 2, out_c), axis=1)


def encoder_block_1d(x, params):
    """x: (N, Cin, L) float32 (PyTorch NCL).  Returns (x_out, p_out) in NCL."""
    n_b, c_in, length = x.shape
    w1, b1, g1, be1, w2, b2, g2, be2 = params        # w: (Cout, Cin, 3)
    c_out = w1.shape[0]
    c2 = 2 * c_out

    # Layout plumbing only: NCL -> NLC slab (channels on the lane axis).
    xs = jnp.transpose(x, (0, 2, 1)).astype(jnp.float32)       # (N, L, Cin)

    # Fuse conv1/conv2 along output channels, one (Cin, 2*Cout) matrix per tap.
    def tap(w, k):                                    # (Cout, Cin, 3) -> (Cin, Cout)
        return jnp.transpose(w[:, :, k], (1, 0))

    w_taps = [jnp.concatenate([tap(w1, k), tap(w2, k)], axis=1).astype(jnp.bfloat16)
              for k in range(3)]                      # 3 x (Cin, 2*Cout) bf16

    def fuse_row(a, b):                               # per-channel vectors -> (1, 2*Cout)
        return jnp.concatenate([a, b]).reshape(1, c2).astype(jnp.float32)

    bias12 = fuse_row(b1, b2)
    gamma12 = fuse_row(g1, g2)
    beta12 = fuse_row(be1, be2)

    const2 = lambda n: (0, 0)
    per_batch = lambda n: (n, 0, 0)

    # ---- pass 1: conv + BN statistics (sequential accumulation over batch) ----
    y, st = pl.pallas_call(
        functools.partial(_conv_stats_kernel, inv_count=1.0 / (n_b * length)),
        out_shape=(jax.ShapeDtypeStruct((n_b, length, c2), jnp.float32),
                   jax.ShapeDtypeStruct((2, c2), jnp.float32)),
        grid=(n_b,),
        in_specs=[
            pl.BlockSpec((1, length, c_in), per_batch),
            pl.BlockSpec((c_in, c2), const2),
            pl.BlockSpec((c_in, c2), const2),
            pl.BlockSpec((c_in, c2), const2),
            pl.BlockSpec((1, c2), const2),
            pl.BlockSpec((1, c2), const2),
            pl.BlockSpec((1, c2), const2),
        ],
        out_specs=(pl.BlockSpec((1, length, c2), per_batch),
                   pl.BlockSpec((2, c2), const2)),
        compiler_params=pltpu.CompilerParams(dimension_semantics=("arbitrary",)),
        cost_estimate=pl.CostEstimate(
            flops=2 * n_b * length * 3 * c_in * c2,
            transcendentals=0,
            bytes_accessed=(n_b * length * c_in + n_b * length * c2
                            + 3 * c_in * c2) * 4),
    )(xs, w_taps[0], w_taps[1], w_taps[2], bias12, gamma12, beta12)

    # ---- pass 2: normalize + gate + pool (independent per batch element) ----
    x_nlc, p_nlc = pl.pallas_call(
        functools.partial(_norm_gate_pool_kernel, out_c=c_out),
        out_shape=(jax.ShapeDtypeStruct((n_b, length, c_out), jnp.float32),
                   jax.ShapeDtypeStruct((n_b, length // 2, c_out), jnp.float32)),
        grid=(n_b,),
        in_specs=[pl.BlockSpec((2, c2), const2),
                  pl.BlockSpec((1, length, c2), per_batch)],
        out_specs=(pl.BlockSpec((1, length, c_out), per_batch),
                   pl.BlockSpec((1, length // 2, c_out), per_batch)),
        compiler_params=pltpu.CompilerParams(dimension_semantics=("parallel",)),
        cost_estimate=pl.CostEstimate(
            flops=6 * n_b * length * c_out,
            transcendentals=n_b * length * c_out,
            bytes_accessed=(n_b * length * c2 + n_b * length * c_out
                            + n_b * (length // 2) * c_out) * 4),
    )(st, y)

    # Layout plumbing: back to PyTorch NCL.
    x_out = jnp.transpose(x_nlc, (0, 2, 1))                     # (N, Cout, L)
    p_out = jnp.transpose(p_nlc, (0, 2, 1))                     # (N, Cout, L//2)
    return x_out, p_out


def _reference(x, params):
    """Pure-JAX reference mirroring the PyTorch forward (training-mode BN)."""
    w1, b1, g1, be1, w2, b2, g2, be2 = params

    def conv_bn(w, b, g, be):
        y = jax.lax.conv_general_dilated(
            x, w, window_strides=(1,), padding=((1, 1),),
            dimension_numbers=('NCH', 'OIH', 'NCH'))
        y = y + b[None, :, None]
        mean = jnp.mean(y, axis=(0, 2), keepdims=True)
        var = jnp.mean((y - mean) ** 2, axis=(0, 2), keepdims=True)
        return (y - mean) / jnp.sqrt(var + BN_EPS) * g[None, :, None] + be[None, :, None]

    z1 = conv_bn(w1, b1, g1, be1)
    z2 = conv_bn(w2, b2, g2, be2)
    xo = z1 * jax.nn.sigmoid(z2)
    N, C, L = xo.shape
    p = jnp.max(xo.reshape(N, C, L // 2, 2), axis=-1)
    return xo, p


if __name__ == "__main__":
    N, Cin, Cout, L = 2, 4, 8, 16

    key = jax.random.PRNGKey(0)
    ks = jax.random.split(key, 9)
    x = jax.random.normal(ks[0], (N, Cin, L), dtype=jnp.float32)

    # Deterministic parameter init (shapes from conv_block_gated_1D.__init__).
    w1 = 0.1 * jax.random.normal(ks[1], (Cout, Cin, 3), dtype=jnp.float32)
    b1 = 0.1 * jax.random.normal(ks[2], (Cout,), dtype=jnp.float32)
    g1 = 1.0 + 0.1 * jax.random.normal(ks[3], (Cout,), dtype=jnp.float32)
    be1 = 0.1 * jax.random.normal(ks[4], (Cout,), dtype=jnp.float32)
    w2 = 0.1 * jax.random.normal(ks[5], (Cout, Cin, 3), dtype=jnp.float32)
    b2 = 0.1 * jax.random.normal(ks[6], (Cout,), dtype=jnp.float32)
    g2 = 1.0 + 0.1 * jax.random.normal(ks[7], (Cout,), dtype=jnp.float32)
    be2 = 0.1 * jax.random.normal(ks[8], (Cout,), dtype=jnp.float32)
    params = (w1, b1, g1, be1, w2, b2, g2, be2)

    x_out, p_out = jax.jit(encoder_block_1d)(x, params)
    jax.block_until_ready((x_out, p_out))

    x_ref, p_ref = _reference(x, params)
    assert x_out.shape == (N, Cout, L) and p_out.shape == (N, Cout, L // 2)
    # bf16 MXU inputs (f32 accumulation) -> slightly looser tolerance than pure f32.
    assert jnp.allclose(x_out, x_ref, atol=2e-2, rtol=2e-2)
    assert jnp.allclose(p_out, p_ref, atol=2e-2, rtol=2e-2)

    print("KERNEL_OK")
</pallas_src>

<mosaic_0001>
module attributes {stable_mosaic.version = 11 : i64} {
  func.func @_conv_stats_kernel(%arg0: i32, %arg1: memref<1x16x4xf32, #tpu.memory_space<vmem>>, %arg2: memref<4x16xbf16, #tpu.memory_space<vmem>>, %arg3: memref<4x16xbf16, #tpu.memory_space<vmem>>, %arg4: memref<4x16xbf16, #tpu.memory_space<vmem>>, %arg5: memref<1x16xf32, #tpu.memory_space<vmem>>, %arg6: memref<1x16xf32, #tpu.memory_space<vmem>>, %arg7: memref<1x16xf32, #tpu.memory_space<vmem>>, %arg8: memref<1x16x16xf32, #tpu.memory_space<vmem>>, %arg9: memref<2x16xf32, #tpu.memory_space<vmem>>) attributes {dimension_semantics = [#tpu.dimension_semantics<arbitrary>], iteration_bounds = array<i64: 2>, scalar_prefetch = 0 : i64, scratch_operands = 0 : i64, tpu.core_type = #tpu.core_type<tc>, window_params = [{transform_indices = @transform_0, window_bounds = array<i64: 1, 16, 4>}, {pipeline_mode = #tpu.pipeline_mode<synchronous>, transform_indices = @transform_1, window_bounds = array<i64: 4, 16>}, {pipeline_mode = #tpu.pipeline_mode<synchronous>, transform_indices = @transform_2, window_bounds = array<i64: 4, 16>}, {pipeline_mode = #tpu.pipeline_mode<synchronous>, transform_indices = @transform_3, window_bounds = array<i64: 4, 16>}, {pipeline_mode = #tpu.pipeline_mode<synchronous>, transform_indices = @transform_4, window_bounds = array<i64: 1, 16>}, {pipeline_mode = #tpu.pipeline_mode<synchronous>, transform_indices = @transform_5, window_bounds = array<i64: 1, 16>}, {pipeline_mode = #tpu.pipeline_mode<synchronous>, transform_indices = @transform_6, window_bounds = array<i64: 1, 16>}, {transform_indices = @transform_7, window_bounds = array<i64: 1, 16, 16>}, {pipeline_mode = #tpu.pipeline_mode<synchronous>, transform_indices = @transform_8, window_bounds = array<i64: 2, 16>}]} {
    %c0 = arith.constant 0 : index
    %c0_0 = arith.constant 0 : index
    %c0_1 = arith.constant 0 : index
    %0 = vector.load %arg1[%c0, %c0_0, %c0_1] : memref<1x16x4xf32, #tpu.memory_space<vmem>>, vector<1x16x4xf32>
    %1 = vector.shape_cast %0 : vector<1x16x4xf32> to vector<16x4xf32>
    %cst = arith.constant 0.000000e+00 : f32
    %2 = vector.broadcast %cst : f32 to vector<1x4xf32>
    %3 = vector.extract_strided_slice %1 {offsets = [0, 0], sizes = [15, 4], strides = [1, 1]} : vector<16x4xf32> to vector<15x4xf32>
    %4 = tpu.concatenate %2, %3 in 0 : vector<1x4xf32>, vector<15x4xf32> -> vector<16x4xf32>
    %5 = vector.extract_strided_slice %1 {offsets = [1, 0], sizes = [15, 4], strides = [1, 1]} : vector<16x4xf32> to vector<15x4xf32>
    %6 = tpu.concatenate %5, %2 in 0 : vector<15x4xf32>, vector<1x4xf32> -> vector<16x4xf32>
    %7 = arith.truncf %4 : vector<16x4xf32> to vector<16x4xbf16>
    %c0_2 = arith.constant 0 : index
    %c0_3 = arith.constant 0 : index
    %8 = vector.load %arg2[%c0_2, %c0_3] : memref<4x16xbf16, #tpu.memory_space<vmem>>, vector<4x16xbf16>
    %cst_4 = arith.constant dense<0.000000e+00> : vector<16x16xf32>
    %9 = tpu.matmul %7, %8, %cst_4 {dimension_numbers = #tpu.dot_dimension_numbers<[1], [0], [0], [1], [0, 0, 1, 1], [], []>} : vector<16x4xbf16>, vector<4x16xbf16>, vector<16x16xf32> -> vector<16x16xf32>
    %10 = arith.truncf %1 : vector<16x4xf32> to vector<16x4xbf16>
    %c0_5 = arith.constant 0 : index
    %c0_6 = arith.constant 0 : index
    %11 = vector.load %arg3[%c0_5, %c0_6] : memref<4x16xbf16, #tpu.memory_space<vmem>>, vector<4x16xbf16>
    %cst_7 = arith.constant dense<0.000000e+00> : vector<16x16xf32>
    %12 = tpu.matmul %10, %11, %cst_7 {dimension_numbers = #tpu.dot_dimension_numbers<[1], [0], [0], [1], [0, 0, 1, 1], [], []>} : vector<16x4xbf16>, vector<4x16xbf16>, vector<16x16xf32> -> vector<16x16xf32>
    %13 = arith.addf %9, %12 : vector<16x16xf32>
    %14 = arith.truncf %6 : vector<16x4xf32> to vector<16x4xbf16>
    %c0_8 = arith.constant 0 : index
    %c0_9 = arith.constant 0 : index
    %15 = vector.load %arg4[%c0_8, %c0_9] : memref<4x16xbf16, #tpu.memory_space<vmem>>, vector<4x16xbf16>
    %cst_10 = arith.constant dense<0.000000e+00> : vector<16x16xf32>
    %16 = tpu.matmul %14, %15, %cst_10 {dimension_numbers = #tpu.dot_dimension_numbers<[1], [0], [0], [1], [0, 0, 1, 1], [], []>} : vector<16x4xbf16>, vector<4x16xbf16>, vector<16x16xf32> -> vector<16x16xf32>
    %17 = arith.addf %13, %16 : vector<16x16xf32>
    %c0_11 = arith.constant 0 : index
    %c0_12 = arith.constant 0 : index
    %18 = vector.load %arg5[%c0_11, %c0_12] : memref<1x16xf32, #tpu.memory_space<vmem>>, vector<1x16xf32>
    %19 = vector.broadcast %18 : vector<1x16xf32> to vector<16x16xf32>
    %20 = arith.addf %17, %19 : vector<16x16xf32>
    %c0_13 = arith.constant 0 : index
    %c0_14 = arith.constant 0 : index
    %c0_15 = arith.constant 0 : index
    %21 = vector.load %arg8[%c0_13, %c0_14, %c0_15] : memref<1x16x16xf32, #tpu.memory_space<vmem>>, vector<1x16x16xf32>
    %22 = vector.shape_cast %21 : vector<1x16x16xf32> to vector<16x16xf32>
    %23 = vector.shape_cast %20 : vector<16x16xf32> to vector<1x16x16xf32>
    tpu.vector_store %arg8[%c0_13, %c0_14, %c0_15], %23 {strides = array<i32>} : memref<1x16x16xf32, #tpu.memory_space<vmem>>, vector<1x16x16xf32>,
    %c0_i32 = arith.constant 0 : i32
    %24 = arith.cmpi eq, %arg0, %c0_i32 : i32
    %25 = arith.extui %24 : i1 to i32
    %c0_i32_16 = arith.constant 0 : i32
    %26 = arith.cmpi ne, %25, %c0_i32_16 : i32
    scf.if %26 {
      %cst_24 = arith.constant 0.000000e+00 : f32
      %39 = vector.broadcast %cst_24 : f32 to vector<2x16xf32>
      %c0_25 = arith.constant 0 : index
      %c0_26 = arith.constant 0 : index
      %40 = vector.load %arg9[%c0_25, %c0_26] : memref<2x16xf32, #tpu.memory_space<vmem>>, vector<2x16xf32>
      tpu.vector_store %arg9[%c0_25, %c0_26], %39 {strides = array<i32>} : memref<2x16xf32, #tpu.memory_space<vmem>>, vector<2x16xf32>,
    } else {
    }
    %c0_17 = arith.constant 0 : index
    %c0_18 = arith.constant 0 : index
    %27 = vector.load %arg9[%c0_17, %c0_18] : memref<2x16xf32, #tpu.memory_space<vmem>>, vector<2x16xf32>
    %cst_19 = arith.constant dense<0.000000e+00> : vector<16xf32>
    %28 = vector.multi_reduction <add>, %20, %cst_19 [0] : vector<16x16xf32> to vector<16xf32>
    %29 = vector.shape_cast %28 : vector<16xf32> to vector<1x16xf32>
    %30 = arith.mulf %20, %20 : vector<16x16xf32>
    %cst_20 = arith.constant dense<0.000000e+00> : vector<16xf32>
    %31 = vector.multi_reduction <add>, %30, %cst_20 [0] : vector<16x16xf32> to vector<16xf32>
    %32 = vector.shape_cast %31 : vector<16xf32> to vector<1x16xf32>
    %33 = tpu.concatenate %29, %32 in 0 : vector<1x16xf32>, vector<1x16xf32> -> vector<2x16xf32>
    %34 = arith.addf %27, %33 : vector<2x16xf32>
    %c0_21 = arith.constant 0 : index
    %c0_22 = arith.constant 0 : index
    %35 = vector.load %arg9[%c0_21, %c0_22] : memref<2x16xf32, #tpu.memory_space<vmem>>, vector<2x16xf32>
    tpu.vector_store %arg9[%c0_21, %c0_22], %34 {strides = array<i32>} : memref<2x16xf32, #tpu.memory_space<vmem>>, vector<2x16xf32>,
    %c1_i32 = arith.constant 1 : i32
    %36 = arith.cmpi eq, %arg0, %c1_i32 : i32
    %37 = arith.extui %36 : i1 to i32
    %c0_i32_23 = arith.constant 0 : i32
    %38 = arith.cmpi ne, %37, %c0_i32_23 : i32
    scf.if %38 {
      %c0_24 = arith.constant 0 : index
      %c0_25 = arith.constant 0 : index
      %39 = vector.load %arg9[%c0_24, %c0_25] : memref<2x16xf32, #tpu.memory_space<vmem>>, vector<1x16xf32>
      %cst_26 = arith.constant 3.125000e-02 : f32
      %40 = vector.broadcast %cst_26 : f32 to vector<1x16xf32>
      %41 = arith.mulf %39, %40 : vector<1x16xf32>
      %c1 = arith.constant 1 : index
      %c0_27 = arith.constant 0 : index
      %42 = vector.load %arg9[%c1, %c0_27] : memref<2x16xf32, #tpu.memory_space<vmem>>, vector<1x16xf32>
      %cst_28 = arith.constant 3.125000e-02 : f32
      %43 = vector.broadcast %cst_28 : f32 to vector<1x16xf32>
      %44 = arith.mulf %42, %43 : vector<1x16xf32>
      %45 = arith.mulf %41, %41 : vector<1x16xf32>
      %46 = arith.subf %44, %45 : vector<1x16xf32>
      %c0_29 = arith.constant 0 : index
      %c0_30 = arith.constant 0 : index
      %47 = vector.load %arg6[%c0_29, %c0_30] : memref<1x16xf32, #tpu.memory_space<vmem>>, vector<1x16xf32>
      %cst_31 = arith.constant 9.99999974E-6 : f32
      %48 = vector.broadcast %cst_31 : f32 to vector<1x16xf32>
      %49 = arith.addf %46, %48 : vector<1x16xf32>
      %50 = math.rsqrt %49 : vector<1x16xf32>
      %51 = arith.mulf %47, %50 : vector<1x16xf32>
      %c0_32 = arith.constant 0 : index
      %c0_33 = arith.constant 0 : index
      %52 = vector.load %arg7[%c0_32, %c0_33] : memref<1x16xf32, #tpu.memory_space<vmem>>, vector<1x16xf32>
      %53 = arith.mulf %41, %51 : vector<1x16xf32>
      %54 = arith.subf %52, %53 : vector<1x16xf32>
      %55 = tpu.concatenate %51, %54 in 0 : vector<1x16xf32>, vector<1x16xf32> -> vector<2x16xf32>
      %c0_34 = arith.constant 0 : index
      %c0_35 = arith.constant 0 : index
      %56 = vector.load %arg9[%c0_34, %c0_35] : memref<2x16xf32, #tpu.memory_space<vmem>>, vector<2x16xf32>
      tpu.vector_store %arg9[%c0_34, %c0_35], %55 {strides = array<i32>} : memref<2x16xf32, #tpu.memory_space<vmem>>, vector<2x16xf32>,
    } else {
    }
    return
  }
  func.func @transform_0(%arg0: i32) -> (i32, i32, i32) {
    %c0_i32 = arith.constant 0 : i32
    %c0_i32_0 = arith.constant 0 : i32
    %c0_i32_1 = arith.constant 0 : i32
    return %arg0, %c0_i32, %c0_i32_0 : i32, i32, i32
  }
  func.func @transform_1(%arg0: i32) -> (i32, i32) {
    %c0_i32 = arith.constant 0 : i32
    %c0_i32_0 = arith.constant 0 : i32
    %c0_i32_1 = arith.constant 0 : i32
    return %c0_i32, %c0_i32_0 : i32, i32
  }
  func.func @transform_2(%arg0: i32) -> (i32, i32) {
    %c0_i32 = arith.constant 0 : i32
    %c0_i32_0 = arith.constant 0 : i32
    %c0_i32_1 = arith.constant 0 : i32
    return %c0_i32, %c0_i32_0 : i32, i32
  }
  func.func @transform_3(%arg0: i32) -> (i32, i32) {
    %c0_i32 = arith.constant 0 : i32
    %c0_i32_0 = arith.constant 0 : i32
    %c0_i32_1 = arith.constant 0 : i32
    return %c0_i32, %c0_i32_0 : i32, i32
  }
  func.func @transform_4(%arg0: i32) -> (i32, i32) {
    %c0_i32 = arith.constant 0 : i32
    %c0_i32_0 = arith.constant 0 : i32
    %c0_i32_1 = arith.constant 0 : i32
    return %c0_i32, %c0_i32_0 : i32, i32
  }
  func.func @transform_5(%arg0: i32) -> (i32, i32) {
    %c0_i32 = arith.constant 0 : i32
    %c0_i32_0 = arith.constant 0 : i32
    %c0_i32_1 = arith.constant 0 : i32
    return %c0_i32, %c0_i32_0 : i32, i32
  }
  func.func @transform_6(%arg0: i32) -> (i32, i32) {
    %c0_i32 = arith.constant 0 : i32
    %c0_i32_0 = arith.constant 0 : i32
    %c0_i32_1 = arith.constant 0 : i32
    return %c0_i32, %c0_i32_0 : i32, i32
  }
  func.func @transform_7(%arg0: i32) -> (i32, i32, i32) {
    %c0_i32 = arith.constant 0 : i32
    %c0_i32_0 = arith.constant 0 : i32
    %c0_i32_1 = arith.constant 0 : i32
    return %arg0, %c0_i32, %c0_i32_0 : i32, i32, i32
  }
  func.func @transform_8(%arg0: i32) -> (i32, i32) {
    %c0_i32 = arith.constant 0 : i32
    %c0_i32_0 = arith.constant 0 : i32
    %c0_i32_1 = arith.constant 0 : i32
    return %c0_i32, %c0_i32_0 : i32, i32
  }
}

module attributes {stable_mosaic.version = 11 : i64} {
  func.func @_norm_gate_pool_kernel(%arg0: i32, %arg1: memref<2x16xf32, #tpu.memory_space<vmem>>, %arg2: memref<1x16x16xf32, #tpu.memory_space<vmem>>, %arg3: memref<1x16x8xf32, #tpu.memory_space<vmem>>, %arg4: memref<1x8x8xf32, #tpu.memory_space<vmem>>) attributes {dimension_semantics = [#tpu.dimension_semantics<parallel>], iteration_bounds = array<i64: 2>, scalar_prefetch = 0 : i64, scratch_operands = 0 : i64, tpu.core_type = #tpu.core_type<tc>, window_params = [{pipeline_mode = #tpu.pipeline_mode<synchronous>, transform_indices = @transform_0, window_bounds = array<i64: 2, 16>}, {transform_indices = @transform_1, window_bounds = array<i64: 1, 16, 16>}, {transform_indices = @transform_2, window_bounds = array<i64: 1, 16, 8>}, {transform_indices = @transform_3, window_bounds = array<i64: 1, 8, 8>}]} {
    %c0 = arith.constant 0 : index
    %c0_0 = arith.constant 0 : index
    %c0_1 = arith.constant 0 : index
    %0 = vector.load %arg2[%c0, %c0_0, %c0_1] : memref<1x16x16xf32, #tpu.memory_space<vmem>>, vector<1x16x16xf32>
    %1 = vector.shape_cast %0 : vector<1x16x16xf32> to vector<16x16xf32>
    %c0_2 = arith.constant 0 : index
    %c0_3 = arith.constant 0 : index
    %2 = vector.load %arg1[%c0_2, %c0_3] : memref<2x16xf32, #tpu.memory_space<vmem>>, vector<1x16xf32>
    %c1 = arith.constant 1 : index
    %c0_4 = arith.constant 0 : index
    %3 = vector.load %arg1[%c1, %c0_4] : memref<2x16xf32, #tpu.memory_space<vmem>>, vector<1x16xf32>
    %4 = vector.broadcast %2 : vector<1x16xf32> to vector<16x16xf32>
    %5 = arith.mulf %1, %4 : vector<16x16xf32>
    %6 = vector.broadcast %3 : vector<1x16xf32> to vector<16x16xf32>
    %7 = arith.addf %5, %6 : vector<16x16xf32>
    %8 = vector.extract_strided_slice %7 {offsets = [0, 0], sizes = [16, 8], strides = [1, 1]} : vector<16x16xf32> to vector<16x8xf32>
    %9 = vector.extract_strided_slice %7 {offsets = [0, 8], sizes = [16, 8], strides = [1, 1]} : vector<16x16xf32> to vector<16x8xf32>
    %10 = arith.negf %9 : vector<16x8xf32>
    %11 = math.exp %10 : vector<16x8xf32>
    %cst = arith.constant 1.000000e+00 : f32
    %12 = vector.broadcast %cst : f32 to vector<16x8xf32>
    %13 = arith.addf %12, %11 : vector<16x8xf32>
    %14 = arith.divf %12, %13 : vector<16x8xf32>
    %15 = arith.mulf %8, %14 : vector<16x8xf32>
    %c0_5 = arith.constant 0 : index
    %c0_6 = arith.constant 0 : index
    %c0_7 = arith.constant 0 : index
    %16 = vector.load %arg3[%c0_5, %c0_6, %c0_7] : memref<1x16x8xf32, #tpu.memory_space<vmem>>, vector<1x16x8xf32>
    %17 = vector.shape_cast %16 : vector<1x16x8xf32> to vector<16x8xf32>
    %18 = vector.shape_cast %15 : vector<16x8xf32> to vector<1x16x8xf32>
    tpu.vector_store %arg3[%c0_5, %c0_6, %c0_7], %18 {strides = array<i32>} : memref<1x16x8xf32, #tpu.memory_space<vmem>>, vector<1x16x8xf32>,
    %19 = vector.shape_cast %15 : vector<16x8xf32> to vector<8x2x8xf32>
    %cst_8 = arith.constant dense<0xFF800000> : vector<8x8xf32>
    %20 = vector.multi_reduction <maximumf>, %19, %cst_8 [1] : vector<8x2x8xf32> to vector<8x8xf32>
    %c0_9 = arith.constant 0 : index
    %c0_10 = arith.constant 0 : index
    %c0_11 = arith.constant 0 : index
    %21 = vector.load %arg4[%c0_9, %c0_10, %c0_11] : memref<1x8x8xf32, #tpu.memory_space<vmem>>, vector<1x8x8xf32>
    %22 = vector.shape_cast %21 : vector<1x8x8xf32> to vector<8x8xf32>
    %23 = vector.shape_cast %20 : vector<8x8xf32> to vector<1x8x8xf32>
    tpu.vector_store %arg4[%c0_9, %c0_10, %c0_11], %23 {strides = array<i32>} : memref<1x8x8xf32, #tpu.memory_space<vmem>>, vector<1x8x8xf32>,
    return
  }
  func.func @transform_0(%arg0: i32) -> (i32, i32) {
    %c0_i32 = arith.constant 0 : i32
    %c0_i32_0 = arith.constant 0 : i32
    %c0_i32_1 = arith.constant 0 : i32
    return %c0_i32, %c0_i32_0 : i32, i32
  }
  func.func @transform_1(%arg0: i32) -> (i32, i32, i32) {
    %c0_i32 = arith.constant 0 : i32
    %c0_i32_0 = arith.constant 0 : i32
    %c0_i32_1 = arith.constant 0 : i32
    return %arg0, %c0_i32, %c0_i32_0 : i32, i32, i32
  }
  func.func @transform_2(%arg0: i32) -> (i32, i32, i32) {
    %c0_i32 = arith.constant 0 : i32
    %c0_i32_0 = arith.constant 0 : i32
    %c0_i32_1 = arith.constant 0 : i32
    return %arg0, %c0_i32, %c0_i32_0 : i32, i32, i32
  }
  func.func @transform_3(%arg0: i32) -> (i32, i32, i32) {
    %c0_i32 = arith.constant 0 : i32
    %c0_i32_0 = arith.constant 0 : i32
    %c0_i32_1 = arith.constant 0 : i32
    return %arg0, %c0_i32, %c0_i32_0 : i32, i32, i32
  }
}

</mosaic_0001>

<llo_original>
// kernel: encoder_block_1d.2
$region0: #{encoder_block_1d.2}
  #allocation0 [shape = 'u32[]', space=smem, size = 0x4, offset = 0x4, fixed_abs, tag = 'smem constant byte address 0x4 - core index']
  #allocation1 [shape = 'u32[144,128]{1,0:T(1,128)}', space=vmem, size = 0x12000, scoped, tag = 'internal scratch']
  %s0 = inlined_call_operand.vmem [shape: f32[2,16,4], index: 0, kind: input, shape index: {}]
  %s1 = inlined_call_operand.vmem [shape: bf16[4,16], index: 1, kind: input, shape index: {}]
  %s2 = inlined_call_operand.vmem [shape: bf16[4,16], index: 2, kind: input, shape index: {}]
  %s3 = inlined_call_operand.vmem [shape: bf16[4,16], index: 3, kind: input, shape index: {}]
  %s4 = inlined_call_operand.vmem [shape: f32[1,16], index: 4, kind: input, shape index: {}]
  %s5 = inlined_call_operand.vmem [shape: f32[1,16], index: 5, kind: input, shape index: {}]
  %s6 = inlined_call_operand.vmem [shape: f32[1,16], index: 6, kind: input, shape index: {}]
  %s7 = inlined_call_operand.vmem [shape: f32[2,16,16], index: 7, kind: output, shape index: {0}]
  %s8 = inlined_call_operand.vmem [shape: f32[2,16], index: 8, kind: output, shape index: {1}]
  %9 = xla_tuple %s7, %s8
  %s10 = sld [smem:[#allocation0]]
  $region77: #{encoder_block_1d.2} parent=0
    _
  %s12 = ssub.s32 1, %s10
  %s13 = scalar_select 0, %s12, %s10
  loop: start=0, step=1, limit=4
  $region2: #{encoder_block_1d.2} parent=0 // loop_pre_header
    _
  $region3: #{encoder_block_1d.2} parent=0 // loop_header
    %s15 = sphi 0, %s19
    %p16 = scmp.ge.s32.totalorder %s15, 4
    %s25 = sphi 0, %s27
    %s28 = sphi 0, %s25
    %s29 = sphi 0, %s28
    %s45 = sphi 0, %s29
    %s49 = sphi 0, %s49
    %s51 = sphi 0, %s49
    %s52 = sphi 0, %s51
    %s66 = sphi 0, %s52
    %s70 = sphi 0, %s70
    %s72 = sphi 0, %s70
    %s73 = sphi 0, %s72
    %s87 = sphi 0, %s73
    %s91 = sphi 0, %s91
    %s93 = sphi 0, %s91
    %s94 = sphi 0, %s93
    %s108 = sphi 0, %s94
    %s112 = sphi 0, %s112
    %s114 = sphi 0, %s112
    %s115 = sphi 0, %s114
    %s129 = sphi 0, %s115
    %s133 = sphi 0, %s133
    %s135 = sphi 0, %s133
    %s136 = sphi 0, %s135
    %s150 = sphi 0, %s136
    %s154 = sphi 0, %s154
    %s156 = sphi 0, %s154
    %s157 = sphi 0, %s156
    %s171 = sphi 0, %s157
    %s177 = sphi 0, %s179
    %s180 = sphi 0, %s177
    %s181 = sphi 0, %s180
    %s197 = sphi 0, %s181
    %s201 = sphi 0, %s201
    %s203 = sphi 0, %s201
    %s204 = sphi 0, %s203
    %s218 = sphi 0, %s204
  $region4: #{encoder_block_1d.2} parent=0 // loop_header_branch
    %18 = sbr.rel (%p16) target = $region8
  $region5: #{encoder_block_1d.2} parent=0 // loop_body
    %s20 = ssub.s32 %s15, 1
    %s21 = ssub.s32 %s15, 2
    %s22 = sadd.s32 %s15, 1
    %s23 = ssub.s32 %s15, %s22
    %p24 = scmp.eq.s32.totalorder %s23, 0
    %s26 = sadd.s32 %s25, 1
    %s27 = scalar_select %p24, %s25, %s26
    %p30 = pneg %p24
    %p31 = scmp.eq.s32.totalorder %s15, 1
    %p32 = por %p30, %p31
    %p33 = scmp.ne.s32.totalorder %s25, %s28
    %p34 = scmp.eq.s32.totalorder %s15, 0
    %p35 = por %p33, %p34
    %p36 = scmp.ne.s32.totalorder %s25, %s28
    %p37 = scmp.eq.s32.totalorder %s20, 1
    %p38 = por %p36, %p37
    %p39 = scmp.ne.s32.totalorder %s28, %s29
    %p40 = scmp.eq.s32.totalorder %s20, 0
    %p41 = por %p39, %p40
    %p42 = scmp.ne.s32.totalorder %s28, %s29
    %p43 = scmp.eq.s32.totalorder %s21, 1
    %p44 = por %p42, %p43
    %p46 = scmp.ne.s32.totalorder %s29, %s45
    %p47 = scmp.eq.s32.totalorder %s21, 0
    %p48 = por %p46, %p47
    %s50 = sadd.s32 %s49, 1
    %p53 = scmp.eq.s32.totalorder %s15, 1
    %p54 = scmp.ne.s32.totalorder %s49, %s51
    %p55 = scmp.eq.s32.totalorder %s15, 0
    %p56 = por %p54, %p55
    %p57 = scmp.ne.s32.totalorder %s49, %s51
    %p58 = scmp.eq.s32.totalorder %s20, 1
    %p59 = por %p57, %p58
    %p60 = scmp.ne.s32.totalorder %s51, %s52
    %p61 = scmp.eq.s32.totalorder %s20, 0
    %p62 = por %p60, %p61
    %p63 = scmp.ne.s32.totalorder %s51, %s52
    %p64 = scmp.eq.s32.totalorder %s21, 1
    %p65 = por %p63, %p64
    %p67 = scmp.ne.s32.totalorder %s52, %s66
    %p68 = scmp.eq.s32.totalorder %s21, 0
    %p69 = por %p67, %p68
    %s71 = sadd.s32 %s70, 1
    %p74 = scmp.eq.s32.totalorder %s15, 1
    %p75 = scmp.ne.s32.totalorder %s70, %s72
    %p76 = scmp.eq.s32.totalorder %s15, 0
    %p77 = por %p75, %p76
    %p78 = scmp.ne.s32.totalorder %s70, %s72
    %p79 = scmp.eq.s32.totalorder %s20, 1
    %p80 = por %p78, %p79
    %p81 = scmp.ne.s32.totalorder %s72, %s73
    %p82 = scmp.eq.s32.totalorder %s20, 0
    %p83 = por %p81, %p82
    %p84 = scmp.ne.s32.totalorder %s72, %s73
    %p85 = scmp.eq.s32.totalorder %s21, 1
    %p86 = por %p84, %p85
    %p88 = scmp.ne.s32.totalorder %s73, %s87
    %p89 = scmp.eq.s32.totalorder %s21, 0
    %p90 = por %p88, %p89
    %s92 = sadd.s32 %s91, 1
    %p95 = scmp.eq.s32.totalorder %s15, 1
    %p96 = scmp.ne.s32.totalorder %s91, %s93
    %p97 = scmp.eq.s32.totalorder %s15, 0
    %p98 = por %p96, %p97
    %p99 = scmp.ne.s32.totalorder %s91, %s93
    %p100 = scmp.eq.s32.totalorder %s20, 1
    %p101 = por %p99, %p100
    %p102 = scmp.ne.s32.totalorder %s93, %s94
    %p103 = scmp.eq.s32.totalorder %s20, 0
    %p104 = por %p102, %p103
    %p105 = scmp.ne.s32.totalorder %s93, %s94
    %p106 = scmp.eq.s32.totalorder %s21, 1
    %p107 = por %p105, %p106
    %p109 = scmp.ne.s32.totalorder %s94, %s108
    %p110 = scmp.eq.s32.totalorder %s21, 0
    %p111 = por %p109, %p110
    %s113 = sadd.s32 %s112, 1
    %p116 = scmp.eq.s32.totalorder %s15, 1
    %p117 = scmp.ne.s32.totalorder %s112, %s114
    %p118 = scmp.eq.s32.totalorder %s15, 0
    %p119 = por %p117, %p118
    %p120 = scmp.ne.s32.totalorder %s112, %s114
    %p121 = scmp.eq.s32.totalorder %s20, 1
    %p122 = por %p120, %p121
    %p123 = scmp.ne.s32.totalorder %s114, %s115
    %p124 = scmp.eq.s32.totalorder %s20, 0
    %p125 = por %p123, %p124
    %p126 = scmp.ne.s32.totalorder %s114, %s115
    %p127 = scmp.eq.s32.totalorder %s21, 1
    %p128 = por %p126, %p127
    %p130 = scmp.ne.s32.totalorder %s115, %s129
    %p131 = scmp.eq.s32.totalorder %s21, 0
    %p132 = por %p130, %p131
    %s134 = sadd.s32 %s133, 1
    %p137 = scmp.eq.s32.totalorder %s15, 1
    %p138 = scmp.ne.s32.totalorder %s133, %s135
    %p139 = scmp.eq.s32.totalorder %s15, 0
    %p140 = por %p138, %p139
    %p141 = scmp.ne.s32.totalorder %s133, %s135
    %p142 = scmp.eq.s32.totalorder %s20, 1
    %p143 = por %p141, %p142
    %p144 = scmp.ne.s32.totalorder %s135, %s136
    %p145 = scmp.eq.s32.totalorder %s20, 0
    %p146 = por %p144, %p145
    %p147 = scmp.ne.s32.totalorder %s135, %s136
    %p148 = scmp.eq.s32.totalorder %s21, 1
    %p149 = por %p147, %p148
    %p151 = scmp.ne.s32.totalorder %s136, %s150
    %p152 = scmp.eq.s32.totalorder %s21, 0
    %p153 = por %p151, %p152
    %s155 = sadd.s32 %s154, 1
    %p158 = scmp.eq.s32.totalorder %s15, 1
    %p159 = scmp.ne.s32.totalorder %s154, %s156
    %p160 = scmp.eq.s32.totalorder %s15, 0
    %p161 = por %p159, %p160
    %p162 = scmp.ne.s32.totalorder %s154, %s156
    %p163 = scmp.eq.s32.totalorder %s20, 1
    %p164 = por %p162, %p163
    %p165 = scmp.ne.s32.totalorder %s156, %s157
    %p166 = scmp.eq.s32.totalorder %s20, 0
    %p167 = por %p165, %p166
    %p168 = scmp.ne.s32.totalorder %s156, %s157
    %p169 = scmp.eq.s32.totalorder %s21, 1
    %p170 = por %p168, %p169
    %p172 = scmp.ne.s32.totalorder %s157, %s171
    %p173 = scmp.eq.s32.totalorder %s21, 0
    %p174 = por %p172, %p173
    %s175 = ssub.s32 %s15, %s22
    %p176 = scmp.eq.s32.totalorder %s175, 0
    %s178 = sadd.s32 %s177, 1
    %s179 = scalar_select %p176, %s177, %s178
    %p182 = pneg %p176
    %p183 = scmp.eq.s32.totalorder %s15, 1
    %p184 = por %p182, %p183
    %p185 = scmp.ne.s32.totalorder %s177, %s180
    %p186 = scmp.eq.s32.totalorder %s15, 0
    %p187 = por %p185, %p186
    %p188 = scmp.ne.s32.totalorder %s177, %s180
    %p189 = scmp.eq.s32.totalorder %s20, 1
    %p190 = por %p188, %p189
    %p191 = scmp.ne.s32.totalorder %s180, %s181
    %p192 = scmp.eq.s32.totalorder %s20, 0
    %p193 = por %p191, %p192
    %p194 = scmp.ne.s32.totalorder %s180, %s181
    %p195 = scmp.eq.s32.totalorder %s21, 1
    %p196 = por %p194, %p195
    %p198 = scmp.ne.s32.totalorder %s181, %s197
    %p199 = scmp.eq.s32.totalorder %s21, 0
    %p200 = por %p198, %p199
    %s202 = sadd.s32 %s201, 1
    %p205 = scmp.eq.s32.totalorder %s15, 1
    %p206 = scmp.ne.s32.totalorder %s201, %s203
    %p207 = scmp.eq.s32.totalorder %s15, 0
    %p208 = por %p206, %p207
    %p209 = scmp.ne.s32.totalorder %s201, %s203
    %p210 = scmp.eq.s32.totalorder %s20, 1
    %p211 = por %p209, %p210
    %p212 = scmp.ne.s32.totalorder %s203, %s204
    %p213 = scmp.eq.s32.totalorder %s20, 0
    %p214 = por %p212, %p213
    %p215 = scmp.ne.s32.totalorder %s203, %s204
    %p216 = scmp.eq.s32.totalorder %s21, 1
    %p217 = por %p215, %p216
    %p219 = scmp.ne.s32.totalorder %s204, %s218
    %p220 = scmp.eq.s32.totalorder %s21, 0
    %p221 = por %p219, %p220
    %p222 = scmp.le.s32.totalorder 1, %s15
    %p223 = scmp.lt.s32.totalorder %s15, 3
    %p224 = pnand %p222, %p223
    %p225 = pneg %p224
    // Predicated region
    $region9: #{encoder_block_1d.2} parent=5 // pred_check
      _
    $region10: #{encoder_block_1d.2} parent=5 // pred_check_branch
      %227 = sbr.rel (%p224) target = $region12
    $region11: #{encoder_block_1d.2} parent=5 // pred_region
      %s228 = ssub.s32 %s15, 1
      // Predicated region
      $region13: #{encoder_block_1d.2} parent=11 // pred_check
        %p229 = pneg %p62
      $region14: #{encoder_block_1d.2} parent=11 // pred_check_branch
        %231 = sbr.rel (%p229) target = $region16
      $region15: #{encoder_block_1d.2} parent=11 // pred_region
        _
      $region16: #{encoder_block_1d.2} parent=11 // pred_fallthru
        _
      // Predicated region
      $region17: #{encoder_block_1d.2} parent=11 // pred_check
        %p232 = pneg %p83
      $region18: #{encoder_block_1d.2} parent=11 // pred_check_branch
        %234 = sbr.rel (%p232) target = $region20
      $region19: #{encoder_block_1d.2} parent=11 // pred_region
        _
      $region20: #{encoder_block_1d.2} parent=11 // pred_fallthru
        _
      // Predicated region
      $region21: #{encoder_block_1d.2} parent=11 // pred_check
        %p235 = pneg %p104
      $region22: #{encoder_block_1d.2} parent=11 // pred_check_branch
        %237 = sbr.rel (%p235) target = $region24
      $region23: #{encoder_block_1d.2} parent=11 // pred_region
        _
      $region24: #{encoder_block_1d.2} parent=11 // pred_fallthru
        _
      // Predicated region
      $region25: #{encoder_block_1d.2} parent=11 // pred_check
        %p238 = pneg %p125
      $region26: #{encoder_block_1d.2} parent=11 // pred_check_branch
        %240 = sbr.rel (%p238) target = $region28
      $region27: #{encoder_block_1d.2} parent=11 // pred_region
        _
      $region28: #{encoder_block_1d.2} parent=11 // pred_fallthru
        _
      // Predicated region
      $region29: #{encoder_block_1d.2} parent=11 // pred_check
        %p241 = pneg %p146
      $region30: #{encoder_block_1d.2} parent=11 // pred_check_branch
        %243 = sbr.rel (%p241) target = $region32
      $region31: #{encoder_block_1d.2} parent=11 // pred_region
        _
      $region32: #{encoder_block_1d.2} parent=11 // pred_fallthru
        _
      // Predicated region
      $region33: #{encoder_block_1d.2} parent=11 // pred_check
        %p244 = pneg %p167
      $region34: #{encoder_block_1d.2} parent=11 // pred_check_branch
        %246 = sbr.rel (%p244) target = $region36
      $region35: #{encoder_block_1d.2} parent=11 // pred_region
        _
      $region36: #{encoder_block_1d.2} parent=11 // pred_fallthru
        _
    $region12: #{encoder_block_1d.2} parent=5 // pred_fallthru
      _
    %p247 = scmp.lt.s32.totalorder %s15, 2
    // Predicated region
    $region37: #{encoder_block_1d.2} parent=5 // pred_check
      %p248 = pneg %p247
    $region38: #{encoder_block_1d.2} parent=5 // pred_check_branch
      %250 = sbr.rel (%p248) target = $region40
    $region39: #{encoder_block_1d.2} parent=5 // pred_region
      // Predicated region
      $region41: #{encoder_block_1d.2} parent=39 // pred_check
        %p251 = pneg %p35
      $region42: #{encoder_block_1d.2} parent=39 // pred_check_branch
        %253 = sbr.rel (%p251) target = $region44
      $region43: #{encoder_block_1d.2} parent=39 // pred_region
        %p254 = scmp.lt.s32.totalorder %s15, 1
        %s255 = scalar_select %p254, %s15, 1
        %s256 = smul.addr %s255, 2
        %s257 = smul.addr %s256, 8
        %s258 = scalar_lea.vmem %s0, %s257
      $region44: #{encoder_block_1d.2} parent=39 // pred_fallthru
        _
    $region40: #{encoder_block_1d.2} parent=5 // pred_fallthru
      _
    %p259 = scmp.le.s32.totalorder 1, %s15
    %p260 = scmp.lt.s32.totalorder %s15, 3
    %p261 = pnand %p259, %p260
    %p262 = pneg %p261
    // Predicated region
    $region45: #{encoder_block_1d.2} parent=5 // pred_check
      _
    $region46: #{encoder_block_1d.2} parent=5 // pred_check_branch
      %264 = sbr.rel (%p261) target = $region48
    $region47: #{encoder_block_1d.2} parent=5 // pred_region
      %s265 = ssub.s32 %s15, 1
      %p266 = scmp.lt.s32.totalorder %s20, 1
      %s267 = scalar_select %p266, %s20, 1
      %s268 = smul.addr %s267, 2
      %s269 = smul.addr %s268, 8
      %s270 = scalar_lea.vmem %s0, %s269
      %p271 = pneg %p41
      %p272 = pneg %p38
      %p273 = pneg %p62
      %p274 = pneg %p59
      %p275 = pneg %p83
      %p276 = pneg %p80
      %p277 = pneg %p104
      %p278 = pneg %p101
      %p279 = pneg %p125
      %p280 = pneg %p122
      %p281 = pneg %p146
      %p282 = pneg %p143
      %p283 = pneg %p167
      %p284 = pneg %p164
      %p285 = pneg %p193
      %p286 = pneg %p190
      %p287 = scmp.lt.s32.totalorder %s20, 1
      %s288 = scalar_select %p287, %s20, 1
      %s289 = smul.addr %s288, 2
      %s290 = smul.addr %s289, 8
      %s291 = scalar_lea.vmem %s7, %s290
      %p292 = pneg %p214
      %p293 = pneg %p211
      %p294 = scmp.lt.s32.totalorder %s20, 1
      %s295 = scalar_select %p294, %s20, 1
      %s296 = smul.addr %s295, 2
      %s297 = smul.addr %s296, 8
      %s298 = scalar_lea.vmem %s0, %s297
      %p299 = scmp.lt.s32.totalorder %s20, 1
      %s300 = scalar_select %p299, %s20, 1
      %s301 = smul.addr %s300, 2
      %s302 = smul.addr %s301, 8
      %s303 = scalar_lea.vmem %s7, %s302
      %v305 = vld [vmem:[%s298] sm:$0xff]
      %v306 = vld [vmem:[%s298 + $0x8] sm:$0xff]
      %vm309 = vcmask 1040384
      %v310 = vrot.slane %v305, 7
      %v311 = vrot.slane %v306, 7
      %v312 = vsel %vm309, %v310, %v311
      %v315 = vsel %vm309, 0.0, %v310
      %vm316 = vcmask 1046528
      %v317 = vrot.slane %v305, 1
      %v318 = vrot.slane %v306, 1
      %v319 = vsel %vm316, %v317, %v318
      %v322 = vsel %vm316, %v318, 0.0
      %v323 = vpack.c.bf16 %v312, %v315
      %v324 = vld [vmem:[%s1] sm:$0x3]
      %v325 = vpack.c.bf16 %v306, %v305
      %v326 = vld [vmem:[%s2] sm:$0x3]
      %vm327 = vcmask 31744
      %v329 = vsel %vm327, %v325, 0
      %vm331 = vcmask 1041408
      %v333 = vsel %vm331, %v326, 0
      %335 = vmatprep.subr.bf16.mxu0 0
      %336 = vmatpush1.bf16.msra.mxu0 %v333
      %337 = vmatprep.subr.bf16.mxu0 0
      %338 = vmatpush1.bf16.msra.mxu0 0
      %339 = vmatprep.subr.bf16.mxu0 0
      %340 = vmatpush1.bf16.msra.mxu0 0
      %341 = vmatprep.subr.bf16.mxu0 0
      %342 = vmatpush1.bf16.msra.mxu0 0
      %343 = vmatprep.subr.bf16.mxu0 0
      %344 = vmatpush1.bf16.msra.mxu0 0
      %345 = vmatprep.subr.bf16.mxu0 0
      %346 = vmatpush1.bf16.msra.mxu0 0
      %347 = vmatprep.subr.bf16.mxu0 0
      %348 = vmatpush1.bf16.msra.mxu0 0
      %349 = vmatprep.subr.bf16.mxu0 0
      %350 = vmatpush1.bf16.msra.mxu0 0
      %351 = vmatprep.subr.bf16.mxu0 0
      %352 = vmatpush1.bf16.msra.mxu0 0
      %353 = vmatprep.subr.bf16.mxu0 0
      %354 = vmatpush1.bf16.msra.mxu0 0
      %355 = vmatprep.subr.bf16.mxu0 0
      %356 = vmatpush1.bf16.msra.mxu0 0
      %357 = vmatprep.subr.bf16.mxu0 0
      %358 = vmatpush1.bf16.msra.mxu0 0
      %359 = vmatprep.subr.bf16.mxu0 0
      %360 = vmatpush1.bf16.msra.mxu0 0
      %361 = vmatprep.subr.bf16.mxu0 0
      %362 = vmatpush1.bf16.msra.mxu0 0
      %363 = vmatprep.subr.bf16.mxu0 0
      %364 = vmatpush1.bf16.msra.mxu0 0
      %365 = vmatprep.subr.bf16.mxu0 0
      %366 = vmatpush1.bf16.msra.mxu0 0
      %367 = vmatprep.mubr.bf16.mxu0 0
      %368 = vmatmul.mubr.bf16.gmra.mrb[0].mxu0 %v329
      %v369 = vpop.f32.mrb[0].mxu0
      %v370 = vadd.f32 0.0, %v369
      %v371 = vpop.f32.mrb[0].mxu0
      %v372 = vpop.f32.mrb[0].mxu0
      %v373 = vadd.f32 0.0, %v372
      %v374 = vpop.f32.mrb[0].mxu0
      %375 = vdwg.mxu0
      %v377 = vsel %vm327, %v323, 0
      %v380 = vsel %vm331, %v324, 0
      %382 = vmatprep.subr.bf16.mxu0 0
      %383 = vmatpush1.bf16.msra.mxu0 %v380
      %384 = vmatprep.subr.bf16.mxu0 0
      %385 = vmatpush1.bf16.msra.mxu0 0
      %386 = vmatprep.subr.bf16.mxu0 0
      %387 = vmatpush1.bf16.msra.mxu0 0
      %388 = vmatprep.subr.bf16.mxu0 0
      %389 = vmatpush1.bf16.msra.mxu0 0
      %390 = vmatprep.subr.bf16.mxu0 0
      %391 = vmatpush1.bf16.msra.mxu0 0
      %392 = vmatprep.subr.bf16.mxu0 0
      %393 = vmatpush1.bf16.msra.mxu0 0
      %394 = vmatprep.subr.bf16.mxu0 0
      %395 = vmatpush1.bf16.msra.mxu0 0
      %396 = vmatprep.subr.bf16.mxu0 0
      %397 = vmatpush1.bf16.msra.mxu0 0
      %398 = vmatprep.subr.bf16.mxu0 0
      %399 = vmatpush1.bf16.msra.mxu0 0
      %400 = vmatprep.subr.bf16.mxu0 0
      %401 = vmatpush1.bf16.msra.mxu0 0
      %402 = vmatprep.subr.bf16.mxu0 0
      %403 = vmatpush1.bf16.msra.mxu0 0
      %404 = vmatprep.subr.bf16.mxu0 0
      %405 = vmatpush1.bf16.msra.mxu0 0
      %406 = vmatprep.subr.bf16.mxu0 0
      %407 = vmatpush1.bf16.msra.mxu0 0
      %408 = vmatprep.subr.bf16.mxu0 0
      %409 = vmatpush1.bf16.msra.mxu0 0
      %410 = vmatprep.subr.bf16.mxu0 0
      %411 = vmatpush1.bf16.msra.mxu0 0
      %412 = vmatprep.subr.bf16.mxu0 0
      %413 = vmatpush1.bf16.msra.mxu0 0
      %414 = vmatprep.mubr.bf16.mxu0 0
      %415 = vmatmul.mubr.bf16.gmra.mrb[0].mxu0 %v377
      %v416 = vpop.f32.mrb[0].mxu0
      %v417 = vadd.f32 %v370, %v416
      %v418 = vpop.f32.mrb[0].mxu0
      %v419 = vpop.f32.mrb[0].mxu0
      %v420 = vadd.f32 %v373, %v419
      %v421 = vpop.f32.mrb[0].mxu0
      %422 = vdwg.mxu0
      %v423 = vpack.c.bf16 %v322, %v319
      %v424 = vld [vmem:[%s3] sm:$0x3]
      %v426 = vsel %vm327, %v423, 0
      %v429 = vsel %vm331, %v424, 0
      %431 = vmatprep.subr.bf16.mxu0 0
      %432 = vmatpush1.bf16.msra.mxu0 %v429
      %433 = vmatprep.subr.bf16.mxu0 0
      %434 = vmatpush1.bf16.msra.mxu0 0
      %435 = vmatprep.subr.bf16.mxu0 0
      %436 = vmatpush1.bf16.msra.mxu0 0
      %437 = vmatprep.subr.bf16.mxu0 0
      %438 = vmatpush1.bf16.msra.mxu0 0
      %439 = vmatprep.subr.bf16.mxu0 0
      %440 = vmatpush1.bf16.msra.mxu0 0
      %441 = vmatprep.subr.bf16.mxu0 0
      %442 = vmatpush1.bf16.msra.mxu0 0
      %443 = vmatprep.subr.bf16.mxu0 0
      %444 = vmatpush1.bf16.msra.mxu0 0
      %445 = vmatprep.subr.bf16.mxu0 0
      %446 = vmatpush1.bf16.msra.mxu0 0
      %447 = vmatprep.subr.bf16.mxu0 0
      %448 = vmatpush1.bf16.msra.mxu0 0
      %449 = vmatprep.subr.bf16.mxu0 0
      %450 = vmatpush1.bf16.msra.mxu0 0
      %451 = vmatprep.subr.bf16.mxu0 0
      %452 = vmatpush1.bf16.msra.mxu0 0
      %453 = vmatprep.subr.bf16.mxu0 0
      %454 = vmatpush1.bf16.msra.mxu0 0
      %455 = vmatprep.subr.bf16.mxu0 0
      %456 = vmatpush1.bf16.msra.mxu0 0
      %457 = vmatprep.subr.bf16.mxu0 0
      %458 = vmatpush1.bf16.msra.mxu0 0
      %459 = vmatprep.subr.bf16.mxu0 0
      %460 = vmatpush1.bf16.msra.mxu0 0
      %461 = vmatprep.subr.bf16.mxu0 0
      %462 = vmatpush1.bf16.msra.mxu0 0
      %463 = vmatprep.mubr.bf16.mxu0 0
      %464 = vmatmul.mubr.bf16.gmra.mrb[0].mxu0 %v426
      %v465 = vpop.f32.mrb[0].mxu0
      %v466 = vadd.f32 0.0, %v465
      %v467 = vpop.f32.mrb[0].mxu0
      %v468 = vpop.f32.mrb[0].mxu0
      %v469 = vadd.f32 0.0, %v468
      %v470 = vpop.f32.mrb[0].mxu0
      %471 = vdwg.mxu0
      %v472 = vadd.f32 %v417, %v466
      %v473 = vadd.f32 %v420, %v469
      %v474 = vld [vmem:[%s4] sm:$0x1]
      %v476 = vlaneseq
      %v477 = vshrl.u32 %v476, 7
      %v478 = vsub.s32 0, %v477
      %v479 = vrot.slane %v474, %v478
      %v481 = vadd.f32 %v472, %v479
      %v482 = vadd.f32 %v473, %v479
      %vm483 = vcmask 130048
      %484 = vst.msk [vmem:[%s303] sm:$0xff] %vm483, %v481
      %485 = vst.msk [vmem:[%s303 + $0x8] sm:$0xff] %vm483, %v482
      %p486 = scmp.eq.s32.totalorder %s20, 0
      // Predicated region
      $region49: #{encoder_block_1d.2} parent=47 // pred_check
        %p487 = pneg %p486
      $region50: #{encoder_block_1d.2} parent=47 // pred_check_branch
        %489 = sbr.rel (%p487) target = $region52
      $region51: #{encoder_block_1d.2} parent=47 // pred_region
        %vm490 = vcmask 123904
        %491 = vst.msk [vmem:[%s8] sm:$0x3] %vm490, 0.0
      $region52: #{encoder_block_1d.2} parent=47 // pred_fallthru
        _
      %v492 = vld [vmem:[%s8] sm:$0x3]
      %v493 = vsel %vm483, %v481, 0.0
      %v494 = vsel %vm483, %v482, 0.0
      %v495 = vadd.f32 %v493, %v494
      %v496 = vrot.slane %v495, 4
      %v497 = vadd.f32 %v495, %v496
      %v498 = vrot.slane %v497, 2
      %v499 = vadd.f32 %v497, %v498
      %v500 = vrot.slane %v499, 1
      %v501 = vadd.f32 %v499, %v500
      %v502 = vmul.f32 %v481, %v481
      %v503 = vmul.f32 %v482, %v482
      %v504 = vsel %vm483, %v502, 0.0
      %v505 = vsel %vm483, %v503, 0.0
      %v506 = vadd.f32 %v504, %v505
      %v507 = vrot.slane %v506, 4
      %v508 = vadd.f32 %v506, %v507
      %v509 = vrot.slane %v508, 2
      %v510 = vadd.f32 %v508, %v509
      %v511 = vrot.slane %v510, 1
      %v512 = vadd.f32 %v510, %v511
      %v513 = vsel %vm309, %v501, %v512
      %v514 = vadd.f32 %v492, %v513
      %vm515 = vcmask 123904
      %516 = vst.msk [vmem:[%s8] sm:$0x3] %vm515, %v514
      %p517 = scmp.eq.s32.totalorder %s20, 1
      // Predicated region
      $region53: #{encoder_block_1d.2} parent=47 // pred_check
        %p518 = pneg %p517
      $region54: #{encoder_block_1d.2} parent=47 // pred_check_branch
        %520 = sbr.rel (%p518) target = $region56
      $region55: #{encoder_block_1d.2} parent=47 // pred_region
        %v521 = vld [vmem:[%s8] sm:$0x1]
        %v522 = vmul.f32 %v521, 0.03125
        %v523 = vld [vmem:[%s8 + $0x1] sm:$0x1]
        %v524 = vmul.f32 %v523, 0.03125
        %v525 = vmul.f32 %v522, %v522
        %v526 = vsub.f32 %v524, %v525
        %v527 = vld [vmem:[%s5] sm:$0x1]
        %v528 = vadd.f32 %v526, 1e-05
        %v529 = vrsqrt.pop %v528
        %v530 = vmul.f32 %v527, %v529
        %v531 = vld [vmem:[%s6] sm:$0x1]
        %v532 = vmul.f32 %v522, %v530
        %v533 = vsub.f32 %v531, %v532
        %v535 = vlaneseq
        %v536 = vshrl.u32 %v535, 7
        %v537 = vsub.s32 0, %v536
        %v538 = vrot.slane %v533, %v537
        %v540 = vsel %vm309, %v530, %v538
        %541 = vst.msk [vmem:[%s8] sm:$0x3] %vm515, %v540
      $region56: #{encoder_block_1d.2} parent=47 // pred_fallthru
        _
      %p542 = scmp.lt.s32.totalorder %s20, 1
      %s543 = scalar_select %p542, %s20, 1
      %s544 = smul.addr %s543, 2
      %s545 = smul.addr %s544, 8
      %s546 = scalar_lea.vmem %s7, %s545
      // Predicated region
      $region57: #{encoder_block_1d.2} parent=47 // pred_check
        %p547 = pneg %p190
      $region58: #{encoder_block_1d.2} parent=47 // pred_check_branch
        %549 = sbr.rel (%p547) target = $region60
      $region59: #{encoder_block_1d.2} parent=47 // pred_region
        _
      $region60: #{encoder_block_1d.2} parent=47 // pred_fallthru
        _
      // Predicated region
      $region61: #{encoder_block_1d.2} parent=47 // pred_check
        %p550 = pneg %p211
      $region62: #{encoder_block_1d.2} parent=47 // pred_check_branch
        %552 = sbr.rel (%p550) target = $region64
      $region63: #{encoder_block_1d.2} parent=47 // pred_region
        _
      $region64: #{encoder_block_1d.2} parent=47 // pred_fallthru
        _
      // Predicated region
      $region65: #{encoder_block_1d.2} parent=47 // pred_check
        %p553 = pneg %p211
      $region66: #{encoder_block_1d.2} parent=47 // pred_check_branch
        %555 = sbr.rel (%p553) target = $region68
      $region67: #{encoder_block_1d.2} parent=47 // pred_region
        _
      $region68: #{encoder_block_1d.2} parent=47 // pred_fallthru
        _
    $region48: #{encoder_block_1d.2} parent=5 // pred_fallthru
      _
    %p556 = scmp.le.s32.totalorder 2, %s15
    // Predicated region
    $region69: #{encoder_block_1d.2} parent=5 // pred_check
      %p557 = pneg %p556
    $region70: #{encoder_block_1d.2} parent=5 // pred_check_branch
      %559 = sbr.rel (%p557) target = $region72
    $region71: #{encoder_block_1d.2} parent=5 // pred_region
      %s560 = ssub.s32 %s15, 2
      // Predicated region
      $region73: #{encoder_block_1d.2} parent=71 // pred_check
        %p561 = pneg %p196
      $region74: #{encoder_block_1d.2} parent=71 // pred_check_branch
        %563 = sbr.rel (%p561) target = $region76
      $region75: #{encoder_block_1d.2} parent=71 // pred_region
        %p564 = scmp.lt.s32.totalorder %s21, 1
        %s565 = scalar_select %p564, %s21, 1
        %s566 = smul.addr %s565, 2
        %s567 = smul.addr %s566, 8
        %s568 = scalar_lea.vmem %s7, %s567
      $region76: #{encoder_block_1d.2} parent=71 // pred_fallthru
        _
    $region72: #{encoder_block_1d.2} parent=5 // pred_fallthru
      _
  $region6: #{encoder_block_1d.2} parent=0 // loop_footer
    %s19 = sadd.s32 1, %s15
  $region7: #{encoder_block_1d.2} parent=0 // loop_footer_branch
    %14 = sbr.rel target = $region3
  $region8: #{encoder_block_1d.2} parent=0 // loop_exit
    _

// kernel: encoder_block_1d.3
$region0: #{encoder_block_1d.3}
  #allocation0 [shape = 'u32[]', space=smem, size = 0x4, offset = 0x4, fixed_abs, tag = 'smem constant byte address 0x4 - core index']
  #allocation1 [shape = 'u32[144,128]{1,0:T(1,128)}', space=vmem, size = 0x12000, scoped, tag = 'internal scratch']
  %s0 = inlined_call_operand.vmem [shape: f32[2,16], index: 0, kind: input, shape index: {}]
  %s1 = inlined_call_operand.vmem [shape: f32[2,16,16], index: 1, kind: input, shape index: {}]
  %s2 = inlined_call_operand.vmem [shape: f32[2,16,8], index: 2, kind: output, shape index: {0}]
  %s3 = inlined_call_operand.vmem [shape: f32[2,8,8], index: 3, kind: output, shape index: {1}]
  %4 = xla_tuple %s2, %s3
  %s5 = sld [smem:[#allocation0]]
  $region49: #{encoder_block_1d.3} parent=0
    _
  %s7 = ssub.s32 1, %s5
  %s8 = scalar_select 0, %s7, %s5
  loop: start=0, step=1, limit=4
  $region2: #{encoder_block_1d.3} parent=0 // loop_pre_header
    _
  $region3: #{encoder_block_1d.3} parent=0 // loop_header
    %s10 = sphi 0, %s14
    %p11 = scmp.ge.s32.totalorder %s10, 4
    %s18 = sphi 0, %s18
    %s20 = sphi 0, %s18
    %s21 = sphi 0, %s20
    %s35 = sphi 0, %s21
    %s41 = sphi 0, %s43
    %s44 = sphi 0, %s41
    %s45 = sphi 0, %s44
    %s61 = sphi 0, %s45
    %s67 = sphi 0, %s69
    %s70 = sphi 0, %s67
    %s71 = sphi 0, %s70
    %s87 = sphi 0, %s71
    %s93 = sphi 0, %s95
    %s96 = sphi 0, %s93
    %s97 = sphi 0, %s96
    %s113 = sphi 0, %s97
  $region4: #{encoder_block_1d.3} parent=0 // loop_header_branch
    %13 = sbr.rel (%p11) target = $region8
  $region5: #{encoder_block_1d.3} parent=0 // loop_body
    %s15 = ssub.s32 %s10, 1
    %s16 = ssub.s32 %s10, 2
    %s17 = sadd.s32 %s10, 1
    %s19 = sadd.s32 %s18, 1
    %p22 = scmp.eq.s32.totalorder %s10, 1
    %p23 = scmp.ne.s32.totalorder %s18, %s20
    %p24 = scmp.eq.s32.totalorder %s10, 0
    %p25 = por %p23, %p24
    %p26 = scmp.ne.s32.totalorder %s18, %s20
    %p27 = scmp.eq.s32.totalorder %s15, 1
    %p28 = por %p26, %p27
    %p29 = scmp.ne.s32.totalorder %s20, %s21
    %p30 = scmp.eq.s32.totalorder %s15, 0
    %p31 = por %p29, %p30
    %p32 = scmp.ne.s32.totalorder %s20, %s21
    %p33 = scmp.eq.s32.totalorder %s16, 1
    %p34 = por %p32, %p33
    %p36 = scmp.ne.s32.totalorder %s21, %s35
    %p37 = scmp.eq.s32.totalorder %s16, 0
    %p38 = por %p36, %p37
    %s39 = ssub.s32 %s10, %s17
    %p40 = scmp.eq.s32.totalorder %s39, 0
    %s42 = sadd.s32 %s41, 1
    %s43 = scalar_select %p40, %s41, %s42
    %p46 = pneg %p40
    %p47 = scmp.eq.s32.totalorder %s10, 1
    %p48 = por %p46, %p47
    %p49 = scmp.ne.s32.totalorder %s41, %s44
    %p50 = scmp.eq.s32.totalorder %s10, 0
    %p51 = por %p49, %p50
    %p52 = scmp.ne.s32.totalorder %s41, %s44
    %p53 = scmp.eq.s32.totalorder %s15, 1
    %p54 = por %p52, %p53
    %p55 = scmp.ne.s32.totalorder %s44, %s45
    %p56 = scmp.eq.s32.totalorder %s15, 0
    %p57 = por %p55, %p56
    %p58 = scmp.ne.s32.totalorder %s44, %s45
    %p59 = scmp.eq.s32.totalorder %s16, 1
    %p60 = por %p58, %p59
    %p62 = scmp.ne.s32.totalorder %s45, %s61
    %p63 = scmp.eq.s32.totalorder %s16, 0
    %p64 = por %p62, %p63
    %s65 = ssub.s32 %s10, %s17
    %p66 = scmp.eq.s32.totalorder %s65, 0
    %s68 = sadd.s32 %s67, 1
    %s69 = scalar_select %p66, %s67, %s68
    %p72 = pneg %p66
    %p73 = scmp.eq.s32.totalorder %s10, 1
    %p74 = por %p72, %p73
    %p75 = scmp.ne.s32.totalorder %s67, %s70
    %p76 = scmp.eq.s32.totalorder %s10, 0
    %p77 = por %p75, %p76
    %p78 = scmp.ne.s32.totalorder %s67, %s70
    %p79 = scmp.eq.s32.totalorder %s15, 1
    %p80 = por %p78, %p79
    %p81 = scmp.ne.s32.totalorder %s70, %s71
    %p82 = scmp.eq.s32.totalorder %s15, 0
    %p83 = por %p81, %p82
    %p84 = scmp.ne.s32.totalorder %s70, %s71
    %p85 = scmp.eq.s32.totalorder %s16, 1
    %p86 = por %p84, %p85
    %p88 = scmp.ne.s32.totalorder %s71, %s87
    %p89 = scmp.eq.s32.totalorder %s16, 0
    %p90 = por %p88, %p89
    %s91 = ssub.s32 %s10, %s17
    %p92 = scmp.eq.s32.totalorder %s91, 0
    %s94 = sadd.s32 %s93, 1
    %s95 = scalar_select %p92, %s93, %s94
    %p98 = pneg %p92
    %p99 = scmp.eq.s32.totalorder %s10, 1
    %p100 = por %p98, %p99
    %p101 = scmp.ne.s32.totalorder %s93, %s96
    %p102 = scmp.eq.s32.totalorder %s10, 0
    %p103 = por %p101, %p102
    %p104 = scmp.ne.s32.totalorder %s93, %s96
    %p105 = scmp.eq.s32.totalorder %s15, 1
    %p106 = por %p104, %p105
    %p107 = scmp.ne.s32.totalorder %s96, %s97
    %p108 = scmp.eq.s32.totalorder %s15, 0
    %p109 = por %p107, %p108
    %p110 = scmp.ne.s32.totalorder %s96, %s97
    %p111 = scmp.eq.s32.totalorder %s16, 1
    %p112 = por %p110, %p111
    %p114 = scmp.ne.s32.totalorder %s97, %s113
    %p115 = scmp.eq.s32.totalorder %s16, 0
    %p116 = por %p114, %p115
    %p117 = scmp.le.s32.totalorder 1, %s10
    %p118 = scmp.lt.s32.totalorder %s10, 3
    %p119 = pnand %p117, %p118
    %p120 = pneg %p119
    // Predicated region
    $region9: #{encoder_block_1d.3} parent=5 // pred_check
      _
    $region10: #{encoder_block_1d.3} parent=5 // pred_check_branch
      %122 = sbr.rel (%p119) target = $region12
    $region11: #{encoder_block_1d.3} parent=5 // pred_region
      %s123 = ssub.s32 %s10, 1
      // Predicated region
      $region13: #{encoder_block_1d.3} parent=11 // pred_check
        %p124 = pneg %p31
      $region14: #{encoder_block_1d.3} parent=11 // pred_check_branch
        %126 = sbr.rel (%p124) target = $region16
      $region15: #{encoder_block_1d.3} parent=11 // pred_region
        _
      $region16: #{encoder_block_1d.3} parent=11 // pred_fallthru
        _
    $region12: #{encoder_block_1d.3} parent=5 // pred_fallthru
      _
    %p127 = scmp.lt.s32.totalorder %s10, 2
    // Predicated region
    $region17: #{encoder_block_1d.3} parent=5 // pred_check
      %p128 = pneg %p127
    $region18: #{encoder_block_1d.3} parent=5 // pred_check_branch
      %130 = sbr.rel (%p128) target = $region20
    $region19: #{encoder_block_1d.3} parent=5 // pred_region
      // Predicated region
      $region21: #{encoder_block_1d.3} parent=19 // pred_check
        %p131 = pneg %p51
      $region22: #{encoder_block_1d.3} parent=19 // pred_check_branch
        %133 = sbr.rel (%p131) target = $region24
      $region23: #{encoder_block_1d.3} parent=19 // pred_region
        %p134 = scmp.lt.s32.totalorder %s10, 1
        %s135 = scalar_select %p134, %s10, 1
        %s136 = smul.addr %s135, 2
        %s137 = smul.addr %s136, 8
        %s138 = scalar_lea.vmem %s1, %s137
      $region24: #{encoder_block_1d.3} parent=19 // pred_fallthru
        _
    $region20: #{encoder_block_1d.3} parent=5 // pred_fallthru
      _
    %p139 = scmp.le.s32.totalorder 1, %s10
    %p140 = scmp.lt.s32.totalorder %s10, 3
    %p141 = pnand %p139, %p140
    %p142 = pneg %p141
    // Predicated region
    $region25: #{encoder_block_1d.3} parent=5 // pred_check
      _
    $region26: #{encoder_block_1d.3} parent=5 // pred_check_branch
      %144 = sbr.rel (%p141) target = $region28
    $region27: #{encoder_block_1d.3} parent=5 // pred_region
      %s145 = ssub.s32 %s10, 1
      %p146 = pneg %p31
      %p147 = pneg %p28
      %p148 = scmp.lt.s32.totalorder %s15, 1
      %s149 = scalar_select %p148, %s15, 1
      %s150 = smul.addr %s149, 2
      %s151 = smul.addr %s150, 8
      %s152 = scalar_lea.vmem %s1, %s151
      %p153 = pneg %p57
      %p154 = pneg %p54
      %p155 = pneg %p83
      %p156 = pneg %p80
      %p157 = scmp.lt.s32.totalorder %s15, 1
      %s158 = scalar_select %p157, %s15, 1
      %s159 = smul.addr %s158, 2
      %s160 = smul.addr %s159, 8
      %s161 = scalar_lea.vmem %s2, %s160
      %p162 = pneg %p109
      %p163 = pneg %p106
      %p164 = scmp.lt.s32.totalorder %s15, 1
      %s165 = scalar_select %p164, %s15, 1
      %s166 = smul.addr %s165, 8
      %s167 = scalar_lea.vmem %s3, %s166
      %p168 = scmp.lt.s32.totalorder %s15, 1
      %s169 = scalar_select %p168, %s15, 1
      %s170 = smul.addr %s169, 2
      %s171 = smul.addr %s170, 8
      %s172 = scalar_lea.vmem %s1, %s171
      %p173 = scmp.lt.s32.totalorder %s15, 1
      %s174 = scalar_select %p173, %s15, 1
      %s175 = smul.addr %s174, 2
      %s176 = smul.addr %s175, 8
      %s177 = scalar_lea.vmem %s2, %s176
      %p178 = scmp.lt.s32.totalorder %s15, 1
      %s179 = scalar_select %p178, %s15, 1
      %s180 = smul.addr %s179, 8
      %s181 = scalar_lea.vmem %s3, %s180
      %v182 = vld [vmem:[%s172] sm:$0xff]
      %v183 = vld [vmem:[%s172 + $0x8] sm:$0xff]
      %v184 = vld [vmem:[%s0] sm:$0x1]
      %v185 = vld [vmem:[%s0 + $0x1] sm:$0x1]
      %v186 = vlaneseq
      %v187 = vshrl.u32 %v186, 7
      %v188 = vsub.s32 0, %v187
      %v189 = vrot.slane %v184, %v188
      %v190 = vmul.f32 %v182, %v189
      %v191 = vmul.f32 %v183, %v189
      %v192 = vlaneseq
      %v193 = vshrl.u32 %v192, 7
      %v194 = vsub.s32 0, %v193
      %v195 = vrot.slane %v185, %v194
      %v196 = vadd.f32 %v190, %v195
      %v197 = vadd.f32 %v191, %v195
      %v198 = vxor.u32 %v196, 2147483648
      %v199 = vxor.u32 %v197, 2147483648
      %v200 = vmul.f32 %v198, 1.442695
      %v201 = vpow.pop %v200
      %v202 = vmul.f32 %v199, 1.442695
      %v203 = vpow.pop %v202
      %v204 = vadd.f32 %v201, 1.0
      %v205 = vadd.f32 %v203, 1.0
      %v206 = vrcp.pop %v204
      %v207 = vmul.f32 1.0, %v206
      %v208 = vrcp.pop %v205
      %v209 = vmul.f32 1.0, %v208
      %212 = vrot.lane.b32.xlu0 %v207, 120
      %v213 = vpop.permute.xlu0 %212
      %214 = vrot.lane.b32.xlu0 %v209, 120
      %v215 = vpop.permute.xlu0 %214
      %v218 = vmul.f32 %v196, %v213
      %v219 = vmul.f32 %v197, %v215
      %vm220 = vcmask 64512
      %221 = vst.msk [vmem:[%s177] sm:$0xff] %vm220, %v218
      %222 = vst.msk [vmem:[%s177 + $0x8] sm:$0xff] %vm220, %v219
      %v225 = vcombine.high %v218, %v218
      %v227 = vunpack.c.l.s4 1983009808
      %v228 = vunpack.c.0.s8 %v227
      %v229 = vlaneseq
      %v230 = vshrl.u32 %v229, 7
      %v231 = vsub.s32 %v228, %v230
      %v232 = vrot.slane %v218, %v231
      %v234 = vunpack.c.l.s4 1983009808
      %v235 = vunpack.c.0.s8 %v234
      %v236 = vlaneseq
      %v237 = vshrl.u32 %v236, 7
      %v238 = vsub.s32 %v235, %v237
      %v239 = vrot.slane %v225, %v238
      %v240 = vcombine.high %v232, %v232
      %v241 = vcombine.high %v239, %v239
      %v242 = vcombine.high %v219, %v219
      %v244 = vunpack.c.l.s4 1983009808
      %v245 = vunpack.c.0.s8 %v244
      %v246 = vlaneseq
      %v247 = vshrl.u32 %v246, 7
      %v248 = vsub.s32 %v245, %v247
      %v249 = vrot.slane %v219, %v248
      %v251 = vunpack.c.l.s4 1983009808
      %v252 = vunpack.c.0.s8 %v251
      %v253 = vlaneseq
      %v254 = vshrl.u32 %v253, 7
      %v255 = vsub.s32 %v252, %v254
      %v256 = vrot.slane %v242, %v255
      %v257 = vcombine.high %v249, %v249
      %v258 = vcombine.high %v256, %v256
      %vm267 = vcmask 58368
      %v268 = vsel %vm267, %v232, -inf
      %v269 = vrot.slane %v268, 4
      %v270 = vmax.f32 %v268, %v269
      %v271 = vrot.slane %v270, 2
      %v272 = vmax.f32 %v270, %v271
      %v273 = vrot.slane %v272, 1
      %v274 = vmax.f32 %v272, %v273
      %v275 = vsel %vm267, %v240, -inf
      %v276 = vrot.slane %v275, 4
      %v277 = vmax.f32 %v275, %v276
      %v278 = vrot.slane %v277, 2
      %v279 = vmax.f32 %v277, %v278
      %v280 = vrot.slane %v279, 1
      %v281 = vmax.f32 %v279, %v280
      %v282 = vsel %vm267, %v239, -inf
      %v283 = vrot.slane %v282, 4
      %v284 = vmax.f32 %v282, %v283
      %v285 = vrot.slane %v284, 2
      %v286 = vmax.f32 %v284, %v285
      %v287 = vrot.slane %v286, 1
      %v288 = vmax.f32 %v286, %v287
      %v289 = vsel %vm267, %v241, -inf
      %v290 = vrot.slane %v289, 4
      %v291 = vmax.f32 %v289, %v290
      %v292 = vrot.slane %v291, 2
      %v293 = vmax.f32 %v291, %v292
      %v294 = vrot.slane %v293, 1
      %v295 = vmax.f32 %v293, %v294
      %v296 = vsel %vm267, %v249, -inf
      %v297 = vrot.slane %v296, 4
      %v298 = vmax.f32 %v296, %v297
      %v299 = vrot.slane %v298, 2
      %v300 = vmax.f32 %v298, %v299
      %v301 = vrot.slane %v300, 1
      %v302 = vmax.f32 %v300, %v301
      %v303 = vsel %vm267, %v257, -inf
      %v304 = vrot.slane %v303, 4
      %v305 = vmax.f32 %v303, %v304
      %v306 = vrot.slane %v305, 2
      %v307 = vmax.f32 %v305, %v306
      %v308 = vrot.slane %v307, 1
      %v309 = vmax.f32 %v307, %v308
      %v310 = vsel %vm267, %v256, -inf
      %v311 = vrot.slane %v310, 4
      %v312 = vmax.f32 %v310, %v311
      %v313 = vrot.slane %v312, 2
      %v314 = vmax.f32 %v312, %v313
      %v315 = vrot.slane %v314, 1
      %v316 = vmax.f32 %v314, %v315
      %v317 = vsel %vm267, %v258, -inf
      %v318 = vrot.slane %v317, 4
      %v319 = vmax.f32 %v317, %v318
      %v320 = vrot.slane %v319, 2
      %v321 = vmax.f32 %v319, %v320
      %v322 = vrot.slane %v321, 1
      %v323 = vmax.f32 %v321, %v322
      %vm332 = vcmask 1041409
      %v333 = vsel %vm332, %v281, %v274
      %vm334 = vcmask 1042434
      %v335 = vsel %vm334, %v288, %v333
      %vm336 = vcmask 1043459
      %v337 = vsel %vm336, %v295, %v335
      %vm338 = vcmask 1044484
      %v339 = vsel %vm338, %v302, %v337
      %vm340 = vcmask 1045509
      %v341 = vsel %vm340, %v309, %v339
      %vm342 = vcmask 1046534
      %v343 = vsel %vm342, %v316, %v341
      %vm344 = vcmask 1047559
      %v345 = vsel %vm344, %v323, %v343
      %347 = vst.msk [vmem:[%s181] sm:$0xff] %vm220, %v345
      %p348 = scmp.lt.s32.totalorder %s15, 1
      %s349 = scalar_select %p348, %s15, 1
      %s350 = smul.addr %s349, 2
      %s351 = smul.addr %s350, 8
      %s352 = scalar_lea.vmem %s2, %s351
      %p353 = scmp.lt.s32.totalorder %s15, 1
      %s354 = scalar_select %p353, %s15, 1
      %s355 = smul.addr %s354, 8
      %s356 = scalar_lea.vmem %s3, %s355
      // Predicated region
      $region29: #{encoder_block_1d.3} parent=27 // pred_check
        %p357 = pneg %p80
      $region30: #{encoder_block_1d.3} parent=27 // pred_check_branch
        %359 = sbr.rel (%p357) target = $region32
      $region31: #{encoder_block_1d.3} parent=27 // pred_region
        _
      $region32: #{encoder_block_1d.3} parent=27 // pred_fallthru
        _
      // Predicated region
      $region33: #{encoder_block_1d.3} parent=27 // pred_check
        %p360 = pneg %p106
      $region34: #{encoder_block_1d.3} parent=27 // pred_check_branch
        %362 = sbr.rel (%p360) target = $region36
      $region35: #{encoder_block_1d.3} parent=27 // pred_region
        _
      $region36: #{encoder_block_1d.3} parent=27 // pred_fallthru
        _
    $region28: #{encoder_block_1d.3} parent=5 // pred_fallthru
      _
    %p363 = scmp.le.s32.totalorder 2, %s10
    // Predicated region
    $region37: #{encoder_block_1d.3} parent=5 // pred_check
      %p364 = pneg %p363
    $region38: #{encoder_block_1d.3} parent=5 // pred_check_branch
      %366 = sbr.rel (%p364) target = $region40
    $region39: #{encoder_block_1d.3} parent=5 // pred_region
      %s367 = ssub.s32 %s10, 2
      // Predicated region
      $region41: #{encoder_block_1d.3} parent=39 // pred_check
        %p368 = pneg %p86
      $region42: #{encoder_block_1d.3} parent=39 // pred_check_branch
        %370 = sbr.rel (%p368) target = $region44
      $region43: #{encoder_block_1d.3} parent=39 // pred_region
        %p371 = scmp.lt.s32.totalorder %s16, 1
        %s372 = scalar_select %p371, %s16, 1
        %s373 = smul.addr %s372, 2
        %s374 = smul.addr %s373, 8
        %s375 = scalar_lea.vmem %s2, %s374
      $region44: #{encoder_block_1d.3} parent=39 // pred_fallthru
        _
      // Predicated region
      $region45: #{encoder_block_1d.3} parent=39 // pred_check
        %p376 = pneg %p112
      $region46: #{encoder_block_1d.3} parent=39 // pred_check_branch
        %378 = sbr.rel (%p376) target = $region48
      $region47: #{encoder_block_1d.3} parent=39 // pred_region
        %p379 = scmp.lt.s32.totalorder %s16, 1
        %s380 = scalar_select %p379, %s16, 1
        %s381 = smul.addr %s380, 8
        %s382 = scalar_lea.vmem %s3, %s381
      $region48: #{encoder_block_1d.3} parent=39 // pred_fallthru
        _
    $region40: #{encoder_block_1d.3} parent=5 // pred_fallthru
      _
  $region6: #{encoder_block_1d.3} parent=0 // loop_footer
    %s14 = sadd.s32 1, %s10
  $region7: #{encoder_block_1d.3} parent=0 // loop_footer_branch
    %9 = sbr.rel target = $region3
  $region8: #{encoder_block_1d.3} parent=0 // loop_exit
    _

</llo_original>
